<compile_context>
chip_gen: v5e
topology: v5e:2x2
jax: 0.10.0
libtpu: 0.0.40
codegen_flags: <defaults>
</compile_context>

<pallas_src>
import jax
import jax.numpy as jnp
from jax.experimental import pallas as pl
from jax.experimental.pallas import tpu as pltpu

# ----------------------------- config ---------------------------------------
INPUT_DIM = 16
HIDDEN_DIM = 32
SPLIT_DIM = INPUT_DIM // 2
REMAIN_DIM = INPUT_DIM - SPLIT_DIM
SCALE_FACTOR = 1.0
CLAMP_LOG_SCALE = 2.0
ROW_TILE_MAX = 2048        # rows per grid step (sweep 2048-4096 if desired)


# ----------------------------- kernel ---------------------------------------
def _coupling_kernel(x_ref,
                     w1_ref, b1_ref, w2_ref, b2_ref, w3_ref, b3_ref,
                     y_ref, ld_ref):
    """Fused affine coupling forward, row-major layout.

    x_ref : (ROW_TILE, INPUT_DIM)   f32 input tile (rows on sublanes)
    w1_ref: (SPLIT, 2H)   bf16 fused first-layer weights
    w2_ref: (2H, 2H)      bf16 block-diagonal second-layer weights
    w3_ref: (2H, 2R)      bf16 block-diagonal output-layer weights
    b*_ref: (1, dim)      f32 fused biases (sublane-broadcast adds)
    y_ref : (ROW_TILE, INPUT_DIM)   f32 output tile
    ld_ref: (ROW_TILE, 1)           f32 per-row log-det
    """
    x = x_ref[...]                                   # (R, 16) f32
    x1 = x[:, :SPLIT_DIM]                            # (R, 8) conditioning half
    x2 = x[:, SPLIT_DIM:]                            # (R, 8) transformed half

    # fused scale+translation MLP: 3 matmuls, bf16 operands, f32 accumulate
    h = jnp.dot(x1.astype(jnp.bfloat16), w1_ref[...],
                preferred_element_type=jnp.float32) + b1_ref[...]
    h = jnp.maximum(h, 0.0)                          # ReLU (f32)
    h = jnp.dot(h.astype(jnp.bfloat16), w2_ref[...],
                preferred_element_type=jnp.float32) + b2_ref[...]
    h = jnp.maximum(h, 0.0)                          # ReLU (f32)
    out = jnp.dot(h.astype(jnp.bfloat16), w3_ref[...],
                  preferred_element_type=jnp.float32) + b3_ref[...]

    log_scale = jnp.tanh(out[:, :REMAIN_DIM]) * SCALE_FACTOR
    # tanh already bounds |log_scale| <= SCALE_FACTOR; clamp only needed when
    # SCALE_FACTOR exceeds the clamp bound (static Python decision).
    if SCALE_FACTOR > CLAMP_LOG_SCALE:
        log_scale = jnp.clip(log_scale, -CLAMP_LOG_SCALE, CLAMP_LOG_SCALE)
    translation = out[:, REMAIN_DIM:]

    # y1 = x1 ; y2 = x2 * exp(log_scale) + translation  (all f32 elementwise)
    y2 = x2 * jnp.exp(log_scale) + translation
    y_ref[:, :SPLIT_DIM] = x1.astype(y_ref.dtype)
    y_ref[:, SPLIT_DIM:] = y2.astype(y_ref.dtype)

    # log_det = sum over transformed features (lane reduce, width 8)
    ld_ref[...] = jnp.sum(log_scale, axis=1, keepdims=True)


# ----------------------------- wrapper ---------------------------------------
@jax.jit
def affine_coupling_forward(x, params):
    """x: [..., INPUT_DIM] -> (y: [..., INPUT_DIM], log_det: [...])."""
    orig_dtype = x.dtype
    lead_shape = x.shape[:-1]
    n_rows = 1
    for d in lead_shape:
        n_rows *= d
    x2d = x.reshape(n_rows, INPUT_DIM).astype(jnp.float32)

    # adaptive row tile: multiple of 128, capped at ROW_TILE_MAX so large
    # inputs still yield >=2 grid steps (v7x has 2 TensorCores).
    row_tile = int(min(ROW_TILE_MAX, pl.cdiv(max(n_rows, 1), 128) * 128))
    n_pad = pl.cdiv(max(n_rows, 1), row_tile) * row_tile
    if n_pad != n_rows:
        x2d = jnp.pad(x2d, ((0, n_pad - n_rows), (0, 0)))

    # -------- one-time weight packing: fuse scale & translation nets --------
    (ws1, bs1, ws2, bs2, ws3, bs3, wt1, bt1, wt2, bt2, wt3, bt3) = params
    H, R = HIDDEN_DIM, REMAIN_DIM
    f32, bf16 = jnp.float32, jnp.bfloat16
    w1 = jnp.concatenate([ws1, wt1], axis=1).astype(bf16)        # (SPLIT, 2H)
    b1 = jnp.concatenate([bs1, bt1], axis=1).astype(f32)         # (1, 2H)
    zhh = jnp.zeros((H, H), f32)
    w2 = jnp.block([[ws2, zhh], [zhh, wt2]]).astype(bf16)        # (2H, 2H)
    b2 = jnp.concatenate([bs2, bt2], axis=1).astype(f32)         # (1, 2H)
    zhr = jnp.zeros((H, R), f32)
    w3 = jnp.block([[ws3, zhr], [zhr, wt3]]).astype(bf16)        # (2H, 2R)
    b3 = jnp.concatenate([bs3, bt3], axis=1).astype(f32)         # (1, 2R)
    packed = (w1, b1, w2, b2, w3, b3)

    grid = (n_pad // row_tile,)
    weight_specs = [pl.BlockSpec(p.shape, lambda i: (0, 0)) for p in packed]
    in_specs = [pl.BlockSpec((row_tile, INPUT_DIM), lambda i: (i, 0))] + weight_specs
    out_specs = [pl.BlockSpec((row_tile, INPUT_DIM), lambda i: (i, 0)),
                 pl.BlockSpec((row_tile, 1), lambda i: (i, 0))]

    y2d, ld2d = pl.pallas_call(
        _coupling_kernel,
        out_shape=(jax.ShapeDtypeStruct((n_pad, INPUT_DIM), jnp.float32),
                   jax.ShapeDtypeStruct((n_pad, 1), jnp.float32)),
        grid=grid,
        in_specs=in_specs,
        out_specs=out_specs,
        compiler_params=pltpu.CompilerParams(
            dimension_semantics=("parallel",)),    # shards rows across v7x TCs
    )(x2d, *packed)

    y = y2d[:n_rows].reshape(*lead_shape, INPUT_DIM).astype(orig_dtype)
    log_det = ld2d[:n_rows, 0].reshape(lead_shape).astype(orig_dtype)
    return y, log_det


# ----------------------------- params ---------------------------------------
def init_params(key):
    """Synthetic init matching the PyTorch module's shapes.

    CouplingNetwork: Linear(SPLIT->H), ReLU, Linear(H->H), ReLU, Linear(H->REM)
    NOTE: PyTorch zero-inits the final Linear (layer == identity at init); we
    use small nonzero final weights so the kernel exercises a non-trivial
    transform. Weights are stored (in, out); biases as (1, dim).
    """
    def xavier(key, fan_in, fan_out):
        bound = (6.0 / (fan_in + fan_out)) ** 0.5
        return jax.random.uniform(key, (fan_in, fan_out), jnp.float32,
                                  -bound, bound)

    keys = jax.random.split(key, 6)
    ws1 = xavier(keys[0], SPLIT_DIM, HIDDEN_DIM)
    bs1 = jnp.zeros((1, HIDDEN_DIM), jnp.float32)
    ws2 = xavier(keys[1], HIDDEN_DIM, HIDDEN_DIM)
    bs2 = jnp.zeros((1, HIDDEN_DIM), jnp.float32)
    ws3 = 0.1 * xavier(keys[2], HIDDEN_DIM, REMAIN_DIM)
    bs3 = jnp.zeros((1, REMAIN_DIM), jnp.float32)
    wt1 = xavier(keys[3], SPLIT_DIM, HIDDEN_DIM)
    bt1 = jnp.zeros((1, HIDDEN_DIM), jnp.float32)
    wt2 = xavier(keys[4], HIDDEN_DIM, HIDDEN_DIM)
    bt2 = jnp.zeros((1, HIDDEN_DIM), jnp.float32)
    wt3 = 0.1 * xavier(keys[5], HIDDEN_DIM, REMAIN_DIM)
    bt3 = jnp.zeros((1, REMAIN_DIM), jnp.float32)
    return (ws1, bs1, ws2, bs2, ws3, bs3, wt1, bt1, wt2, bt2, wt3, bt3)


# ----------------------------- references -------------------------------------
def reference_forward(x, params):
    """Pure f32 reference of the PyTorch forward semantics."""
    (ws1, bs1, ws2, bs2, ws3, bs3, wt1, bt1, wt2, bt2, wt3, bt3) = params
    x1 = x[..., :SPLIT_DIM]
    x2 = x[..., SPLIT_DIM:]

    def mlp(z, w1, b1, w2, b2, w3, b3):
        h = jax.nn.relu(z @ w1 + b1[0])
        h = jax.nn.relu(h @ w2 + b2[0])
        return h @ w3 + b3[0]

    ls = jnp.clip(jnp.tanh(mlp(x1, ws1, bs1, ws2, bs2, ws3, bs3)) * SCALE_FACTOR,
                  -CLAMP_LOG_SCALE, CLAMP_LOG_SCALE)
    tr = mlp(x1, wt1, bt1, wt2, bt2, wt3, bt3)
    y2 = x2 * jnp.exp(ls) + tr
    return jnp.concatenate([x1, y2], axis=-1), jnp.sum(ls, axis=-1)


def reference_forward_mixed(x, params):
    """Reference mirroring the kernel's precision: bf16 matmul operands,
    f32 accumulation, f32 elementwise math."""
    (ws1, bs1, ws2, bs2, ws3, bs3, wt1, bt1, wt2, bt2, wt3, bt3) = params
    x1 = x[..., :SPLIT_DIM].astype(jnp.float32)
    x2 = x[..., SPLIT_DIM:].astype(jnp.float32)

    def mm(a, w):
        return jnp.dot(a.astype(jnp.bfloat16), w.astype(jnp.bfloat16),
                       preferred_element_type=jnp.float32)

    def mlp(z, w1, b1, w2, b2, w3, b3):
        h = jax.nn.relu(mm(z, w1) + b1[0])
        h = jax.nn.relu(mm(h, w2) + b2[0])
        return mm(h, w3) + b3[0]

    ls = jnp.clip(jnp.tanh(mlp(x1, ws1, bs1, ws2, bs2, ws3, bs3)) * SCALE_FACTOR,
                  -CLAMP_LOG_SCALE, CLAMP_LOG_SCALE)
    tr = mlp(x1, wt1, bt1, wt2, bt2, wt3, bt3)
    y2 = x2 * jnp.exp(ls) + tr
    return jnp.concatenate([x1, y2], axis=-1), jnp.sum(ls, axis=-1)


# ----------------------------- main ------------------------------------------
if __name__ == "__main__":
    key = jax.random.PRNGKey(0)
    kx, kp = jax.random.split(key)

    # x: [batch=2, seq=8, input_dim=16]  (leading dims flattened to rows)
    x = jax.random.normal(kx, (2, 8, INPUT_DIM), jnp.float32)
    params = init_params(kp)

    y, log_det = affine_coupling_forward(x, params)
    jax.block_until_ready((y, log_det))

    assert y.shape == x.shape and log_det.shape == x.shape[:-1]

    # tight check against a reference with identical (bf16-operand) precision
    y_mref, ld_mref = reference_forward_mixed(x, params)
    assert jnp.allclose(y, y_mref, atol=2e-3, rtol=2e-3)
    assert jnp.allclose(log_det, ld_mref, atol=2e-3, rtol=2e-3)

    # looser check against the pure-f32 module semantics (bf16 MXU operands
    # intentionally trade a small amount of matmul precision for speed)
    y_ref, ld_ref = reference_forward(x, params)
    assert jnp.allclose(y, y_ref, atol=5e-2, rtol=5e-2)
    assert jnp.allclose(log_det, ld_ref, atol=5e-2, rtol=5e-2)

    print("KERNEL_OK")
</pallas_src>

<mosaic_0001>
module attributes {stable_mosaic.version = 11 : i64} {
  func.func @_coupling_kernel(%arg0: i32, %arg1: memref<128x16xf32, #tpu.memory_space<vmem>>, %arg2: memref<8x64xbf16, #tpu.memory_space<vmem>>, %arg3: memref<1x64xf32, #tpu.memory_space<vmem>>, %arg4: memref<64x64xbf16, #tpu.memory_space<vmem>>, %arg5: memref<1x64xf32, #tpu.memory_space<vmem>>, %arg6: memref<64x16xbf16, #tpu.memory_space<vmem>>, %arg7: memref<1x16xf32, #tpu.memory_space<vmem>>, %arg8: memref<128x16xf32, #tpu.memory_space<vmem>>, %arg9: memref<128x1xf32, #tpu.memory_space<vmem>>) attributes {dimension_semantics = [#tpu.dimension_semantics<parallel>], iteration_bounds = array<i64: 1>, scalar_prefetch = 0 : i64, scratch_operands = 0 : i64, tpu.core_type = #tpu.core_type<tc>, window_params = [{transform_indices = @transform_0, window_bounds = array<i64: 128, 16>}, {pipeline_mode = #tpu.pipeline_mode<synchronous>, transform_indices = @transform_1, window_bounds = array<i64: 8, 64>}, {pipeline_mode = #tpu.pipeline_mode<synchronous>, transform_indices = @transform_2, window_bounds = array<i64: 1, 64>}, {pipeline_mode = #tpu.pipeline_mode<synchronous>, transform_indices = @transform_3, window_bounds = array<i64: 64, 64>}, {pipeline_mode = #tpu.pipeline_mode<synchronous>, transform_indices = @transform_4, window_bounds = array<i64: 1, 64>}, {pipeline_mode = #tpu.pipeline_mode<synchronous>, transform_indices = @transform_5, window_bounds = array<i64: 64, 16>}, {pipeline_mode = #tpu.pipeline_mode<synchronous>, transform_indices = @transform_6, window_bounds = array<i64: 1, 16>}, {transform_indices = @transform_7, window_bounds = array<i64: 128, 16>}, {transform_indices = @transform_8, window_bounds = array<i64: 128, 1>}]} {
    %c0 = arith.constant 0 : index
    %c0_0 = arith.constant 0 : index
    %0 = vector.load %arg1[%c0, %c0_0] : memref<128x16xf32, #tpu.memory_space<vmem>>, vector<128x16xf32>
    %1 = vector.extract_strided_slice %0 {offsets = [0, 0], sizes = [128, 8], strides = [1, 1]} : vector<128x16xf32> to vector<128x8xf32>
    %2 = vector.extract_strided_slice %0 {offsets = [0, 8], sizes = [128, 8], strides = [1, 1]} : vector<128x16xf32> to vector<128x8xf32>
    %3 = arith.truncf %1 : vector<128x8xf32> to vector<128x8xbf16>
    %c0_1 = arith.constant 0 : index
    %c0_2 = arith.constant 0 : index
    %4 = vector.load %arg2[%c0_1, %c0_2] : memref<8x64xbf16, #tpu.memory_space<vmem>>, vector<8x64xbf16>
    %cst = arith.constant dense<0.000000e+00> : vector<128x64xf32>
    %5 = tpu.matmul %3, %4, %cst {dimension_numbers = #tpu.dot_dimension_numbers<[1], [0], [0], [1], [0, 0, 1, 1], [], []>} : vector<128x8xbf16>, vector<8x64xbf16>, vector<128x64xf32> -> vector<128x64xf32>
    %c0_3 = arith.constant 0 : index
    %c0_4 = arith.constant 0 : index
    %6 = vector.load %arg3[%c0_3, %c0_4] : memref<1x64xf32, #tpu.memory_space<vmem>>, vector<1x64xf32>
    %7 = vector.broadcast %6 : vector<1x64xf32> to vector<128x64xf32>
    %8 = arith.addf %5, %7 : vector<128x64xf32>
    %cst_5 = arith.constant 0.000000e+00 : f32
    %9 = vector.broadcast %cst_5 : f32 to vector<128x64xf32>
    %10 = arith.maximumf %8, %9 : vector<128x64xf32>
    %11 = arith.truncf %10 : vector<128x64xf32> to vector<128x64xbf16>
    %c0_6 = arith.constant 0 : index
    %c0_7 = arith.constant 0 : index
    %12 = vector.load %arg4[%c0_6, %c0_7] : memref<64x64xbf16, #tpu.memory_space<vmem>>, vector<64x64xbf16>
    %cst_8 = arith.constant dense<0.000000e+00> : vector<128x64xf32>
    %13 = tpu.matmul %11, %12, %cst_8 {dimension_numbers = #tpu.dot_dimension_numbers<[1], [0], [0], [1], [0, 0, 1, 1], [], []>} : vector<128x64xbf16>, vector<64x64xbf16>, vector<128x64xf32> -> vector<128x64xf32>
    %c0_9 = arith.constant 0 : index
    %c0_10 = arith.constant 0 : index
    %14 = vector.load %arg5[%c0_9, %c0_10] : memref<1x64xf32, #tpu.memory_space<vmem>>, vector<1x64xf32>
    %15 = vector.broadcast %14 : vector<1x64xf32> to vector<128x64xf32>
    %16 = arith.addf %13, %15 : vector<128x64xf32>
    %cst_11 = arith.constant 0.000000e+00 : f32
    %17 = vector.broadcast %cst_11 : f32 to vector<128x64xf32>
    %18 = arith.maximumf %16, %17 : vector<128x64xf32>
    %19 = arith.truncf %18 : vector<128x64xf32> to vector<128x64xbf16>
    %c0_12 = arith.constant 0 : index
    %c0_13 = arith.constant 0 : index
    %20 = vector.load %arg6[%c0_12, %c0_13] : memref<64x16xbf16, #tpu.memory_space<vmem>>, vector<64x16xbf16>
    %cst_14 = arith.constant dense<0.000000e+00> : vector<128x16xf32>
    %21 = tpu.matmul %19, %20, %cst_14 {dimension_numbers = #tpu.dot_dimension_numbers<[1], [0], [0], [1], [0, 0, 1, 1], [], []>} : vector<128x64xbf16>, vector<64x16xbf16>, vector<128x16xf32> -> vector<128x16xf32>
    %c0_15 = arith.constant 0 : index
    %c0_16 = arith.constant 0 : index
    %22 = vector.load %arg7[%c0_15, %c0_16] : memref<1x16xf32, #tpu.memory_space<vmem>>, vector<1x16xf32>
    %23 = vector.broadcast %22 : vector<1x16xf32> to vector<128x16xf32>
    %24 = arith.addf %21, %23 : vector<128x16xf32>
    %25 = vector.extract_strided_slice %24 {offsets = [0, 0], sizes = [128, 8], strides = [1, 1]} : vector<128x16xf32> to vector<128x8xf32>
    %26 = math.tanh %25 : vector<128x8xf32>
    %cst_17 = arith.constant 1.000000e+00 : f32
    %27 = vector.broadcast %cst_17 : f32 to vector<128x8xf32>
    %28 = arith.mulf %26, %27 : vector<128x8xf32>
    %29 = vector.extract_strided_slice %24 {offsets = [0, 8], sizes = [128, 8], strides = [1, 1]} : vector<128x16xf32> to vector<128x8xf32>
    %30 = math.exp %28 : vector<128x8xf32>
    %31 = arith.mulf %2, %30 : vector<128x8xf32>
    %32 = arith.addf %31, %29 : vector<128x8xf32>
    %c0_18 = arith.constant 0 : index
    %c0_19 = arith.constant 0 : index
    %33 = vector.load %arg8[%c0_18, %c0_19] : memref<128x16xf32, #tpu.memory_space<vmem>>, vector<128x8xf32>
    tpu.vector_store %arg8[%c0_18, %c0_19], %1 {strides = array<i32>} : memref<128x16xf32, #tpu.memory_space<vmem>>, vector<128x8xf32>,
    %c0_20 = arith.constant 0 : index
    %c8 = arith.constant 8 : index
    %34 = vector.load %arg8[%c0_20, %c8] : memref<128x16xf32, #tpu.memory_space<vmem>>, vector<128x8xf32>
    tpu.vector_store %arg8[%c0_20, %c8], %32 {strides = array<i32>} : memref<128x16xf32, #tpu.memory_space<vmem>>, vector<128x8xf32>,
    %cst_21 = arith.constant dense<0.000000e+00> : vector<128xf32>
    %35 = vector.multi_reduction <add>, %28, %cst_21 [1] : vector<128x8xf32> to vector<128xf32>
    %36 = vector.shape_cast %35 : vector<128xf32> to vector<128x1xf32>
    %c0_22 = arith.constant 0 : index
    %c0_23 = arith.constant 0 : index
    %37 = vector.load %arg9[%c0_22, %c0_23] : memref<128x1xf32, #tpu.memory_space<vmem>>, vector<128x1xf32>
    tpu.vector_store %arg9[%c0_22, %c0_23], %36 {strides = array<i32>} : memref<128x1xf32, #tpu.memory_space<vmem>>, vector<128x1xf32>,
    return
  }
  func.func @transform_0(%arg0: i32) -> (i32, i32) {
    %c0_i32 = arith.constant 0 : i32
    %c0_i32_0 = arith.constant 0 : i32
    return %arg0, %c0_i32 : i32, i32
  }
  func.func @transform_1(%arg0: i32) -> (i32, i32) {
    %c0_i32 = arith.constant 0 : i32
    %c0_i32_0 = arith.constant 0 : i32
    %c0_i32_1 = arith.constant 0 : i32
    return %c0_i32, %c0_i32_0 : i32, i32
  }
  func.func @transform_2(%arg0: i32) -> (i32, i32) {
    %c0_i32 = arith.constant 0 : i32
    %c0_i32_0 = arith.constant 0 : i32
    %c0_i32_1 = arith.constant 0 : i32
    return %c0_i32, %c0_i32_0 : i32, i32
  }
  func.func @transform_3(%arg0: i32) -> (i32, i32) {
    %c0_i32 = arith.constant 0 : i32
    %c0_i32_0 = arith.constant 0 : i32
    %c0_i32_1 = arith.constant 0 : i32
    return %c0_i32, %c0_i32_0 : i32, i32
  }
  func.func @transform_4(%arg0: i32) -> (i32, i32) {
    %c0_i32 = arith.constant 0 : i32
    %c0_i32_0 = arith.constant 0 : i32
    %c0_i32_1 = arith.constant 0 : i32
    return %c0_i32, %c0_i32_0 : i32, i32
  }
  func.func @transform_5(%arg0: i32) -> (i32, i32) {
    %c0_i32 = arith.constant 0 : i32
    %c0_i32_0 = arith.constant 0 : i32
    %c0_i32_1 = arith.constant 0 : i32
    return %c0_i32, %c0_i32_0 : i32, i32
  }
  func.func @transform_6(%arg0: i32) -> (i32, i32) {
    %c0_i32 = arith.constant 0 : i32
    %c0_i32_0 = arith.constant 0 : i32
    %c0_i32_1 = arith.constant 0 : i32
    return %c0_i32, %c0_i32_0 : i32, i32
  }
  func.func @transform_7(%arg0: i32) -> (i32, i32) {
    %c0_i32 = arith.constant 0 : i32
    %c0_i32_0 = arith.constant 0 : i32
    return %arg0, %c0_i32 : i32, i32
  }
  func.func @transform_8(%arg0: i32) -> (i32, i32) {
    %c0_i32 = arith.constant 0 : i32
    %c0_i32_0 = arith.constant 0 : i32
    return %arg0, %c0_i32 : i32, i32
  }
}

</mosaic_0001>

<llo_original>
// kernel: squeeze.1
$region0: #{squeeze.1}
  %s0 = inlined_call_operand.vmem [shape: f32[16], index: 0, kind: input, shape index: {}]
  %s1 = inlined_call_operand.hbm [shape: f32[2,8], index: 1, kind: output, shape index: {}]
  $region1: #{squeeze.1} parent=0
    #allocation0 [shape = 'u8[1024]{0}', space=vmem, size = 0x400, scoped, tag = 'operand span for operand 1']
    #allocation1 [shape = 's32[1]{0}', space=sflag, size = 0x4, scoped, tag = 'scoped memory for squeeze.1']
    #allocation2 [shape = 'u8[4096]{0}', space=vmem, size = 0x1000, scoped, tag = 'scoped mem for output reshape']
    #allocation3 [shape = 'u8[4096]{0}', space=vmem, size = 0x1000, scoped, tag = 'scoped mem for input reshape']
    %2 = vsyncpa [#allocation1], 0
    %s4 = ssub.s32 2, 1
    %v5 = vld [vmem:[%s0] sm:%s4]
    %6 = vst [vmem:[#allocation3] sm:%s4] %v5
    %v7 = vld [vmem:[#allocation3] sm:$0x1]
    %vm8 = vcmask 64512
    %9 = vst.msk [vmem:[#allocation2] sm:$0x1] %vm8, %v7
    %v10 = vld [vmem:[#allocation3] sm:$0x1]
    %11 = vrot.lane.b32.xlu0 %v10, 120
    %v12 = vpop.permute.xlu0 %11
    %vm13 = vcmask 64512
    %s14 = scalar_lea.vmem [#allocation2], 1
    %15 = vst.msk [vmem:[%s14] sm:$0x1] %vm13, %v12
    %s17 = ssub.s32 4, 1
    %v18 = vld [vmem:[#allocation2] sm:%s17]
    %s20 = ssub.s32 4, 1
    %21 = vst [vmem:[#allocation0] sm:%s20] %v18
    %23 = vsyncadd [#allocation1], 0
    %s25 = sshll.u32 [#allocation0], 4
    %s26 = int_to_ptr.vmem [resolvable:$true] %s25
    %s27 = sshll.u32 %s1, 4
    %s28 = int_to_ptr.hbm [resolvable:$true] %s27
    %30 = dma.vmem_to_hbm [thread:$0]  %s26, 32, %s28, [#allocation1]
    %32 = dma.done [#allocation1], 32
    %33 = vsyncpa [#allocation1], 1

// kernel: affine_coupling_forward.1
$region0: #{affine_coupling_forward.1}
  #allocation0 [shape = 'u32[]', space=smem, size = 0x4, offset = 0x4, fixed_abs, tag = 'smem constant byte address 0x4 - core index']
  #allocation1 [shape = 'u32[72,128]{1,0:T(1,128)}', space=vmem, size = 0x9000, scoped, tag = 'internal scratch']
  %s0 = inlined_call_operand.vmem [shape: f32[128,16], index: 0, kind: input, shape index: {}]
  %s1 = inlined_call_operand.vmem [shape: bf16[8,64], index: 1, kind: input, shape index: {}]
  %s2 = inlined_call_operand.vmem [shape: f32[1,64], index: 2, kind: input, shape index: {}]
  %s3 = inlined_call_operand.vmem [shape: bf16[64,64], index: 3, kind: input, shape index: {}]
  %s4 = inlined_call_operand.vmem [shape: f32[1,64], index: 4, kind: input, shape index: {}]
  %s5 = inlined_call_operand.vmem [shape: bf16[64,16], index: 5, kind: input, shape index: {}]
  %s6 = inlined_call_operand.vmem [shape: f32[1,16], index: 6, kind: input, shape index: {}]
  %s7 = inlined_call_operand.vmem [shape: f32[128,16], index: 7, kind: output, shape index: {0}]
  %s8 = inlined_call_operand.vmem [shape: f32[128,1], index: 8, kind: output, shape index: {1}]
  %9 = xla_tuple %s7, %s8
  %s10 = sld [smem:[#allocation0]]
  $region46: #{affine_coupling_forward.1} parent=0
    _
  %s12 = ssub.s32 1, %s10
  %s13 = scalar_select 0, %s12, %s10
  // Predicated region
  $region2: #{affine_coupling_forward.1} parent=0 // pred_check
    _
  $region3: #{affine_coupling_forward.1} parent=0 // pred_check_branch
    %15 = sbr.rel (0) target = $region5
  $region4: #{affine_coupling_forward.1} parent=0 // pred_region
    _
  $region5: #{affine_coupling_forward.1} parent=0 // pred_fallthru
    _
  // Predicated region
  $region6: #{affine_coupling_forward.1} parent=0 // pred_check
    _
  $region7: #{affine_coupling_forward.1} parent=0 // pred_check_branch
    %17 = sbr.rel (0) target = $region9
  $region8: #{affine_coupling_forward.1} parent=0 // pred_region
    _
  $region9: #{affine_coupling_forward.1} parent=0 // pred_fallthru
    _
  // Predicated region
  $region10: #{affine_coupling_forward.1} parent=0 // pred_check
    _
  $region11: #{affine_coupling_forward.1} parent=0 // pred_check_branch
    %19 = sbr.rel (0) target = $region13
  $region12: #{affine_coupling_forward.1} parent=0 // pred_region
    _
  $region13: #{affine_coupling_forward.1} parent=0 // pred_fallthru
    _
  // Predicated region
  $region14: #{affine_coupling_forward.1} parent=0 // pred_check
    _
  $region15: #{affine_coupling_forward.1} parent=0 // pred_check_branch
    %21 = sbr.rel (0) target = $region17
  $region16: #{affine_coupling_forward.1} parent=0 // pred_region
    _
  $region17: #{affine_coupling_forward.1} parent=0 // pred_fallthru
    _
  // Predicated region
  $region18: #{affine_coupling_forward.1} parent=0 // pred_check
    _
  $region19: #{affine_coupling_forward.1} parent=0 // pred_check_branch
    %23 = sbr.rel (0) target = $region21
  $region20: #{affine_coupling_forward.1} parent=0 // pred_region
    _
  $region21: #{affine_coupling_forward.1} parent=0 // pred_fallthru
    _
  // Predicated region
  $region22: #{affine_coupling_forward.1} parent=0 // pred_check
    _
  $region23: #{affine_coupling_forward.1} parent=0 // pred_check_branch
    %25 = sbr.rel (0) target = $region25
  $region24: #{affine_coupling_forward.1} parent=0 // pred_region
    _
  $region25: #{affine_coupling_forward.1} parent=0 // pred_fallthru
    _
  // Predicated region
  $region26: #{affine_coupling_forward.1} parent=0 // pred_check
    _
  $region27: #{affine_coupling_forward.1} parent=0 // pred_check_branch
    %27 = sbr.rel (0) target = $region29
  $region28: #{affine_coupling_forward.1} parent=0 // pred_region
    _
  $region29: #{affine_coupling_forward.1} parent=0 // pred_fallthru
    _
  %v29 = vld [vmem:[%s0] sm:$0xff]
  %v30 = vld [vmem:[%s0 + $0x8] sm:$0xff]
  %v31 = vld [vmem:[%s0 + $0x10] sm:$0xff]
  %v32 = vld [vmem:[%s0 + $0x18] sm:$0xff]
  %v33 = vld [vmem:[%s0 + $0x20] sm:$0xff]
  %v34 = vld [vmem:[%s0 + $0x28] sm:$0xff]
  %v35 = vld [vmem:[%s0 + $0x30] sm:$0xff]
  %v36 = vld [vmem:[%s0 + $0x38] sm:$0xff]
  %v37 = vld [vmem:[%s0 + $0x40] sm:$0xff]
  %v38 = vld [vmem:[%s0 + $0x48] sm:$0xff]
  %v39 = vld [vmem:[%s0 + $0x50] sm:$0xff]
  %v40 = vld [vmem:[%s0 + $0x58] sm:$0xff]
  %v41 = vld [vmem:[%s0 + $0x60] sm:$0xff]
  %v42 = vld [vmem:[%s0 + $0x68] sm:$0xff]
  %v43 = vld [vmem:[%s0 + $0x70] sm:$0xff]
  %v44 = vld [vmem:[%s0 + $0x78] sm:$0xff]
  %v45 = vpack.c.bf16 %v30, %v29
  %v46 = vpack.c.bf16 %v32, %v31
  %v47 = vpack.c.bf16 %v34, %v33
  %v48 = vpack.c.bf16 %v36, %v35
  %v49 = vpack.c.bf16 %v38, %v37
  %v50 = vpack.c.bf16 %v40, %v39
  %v51 = vpack.c.bf16 %v42, %v41
  %v52 = vpack.c.bf16 %v44, %v43
  %v53 = vld [vmem:[%s1] sm:$0xf]
  %v54 = vld [vmem:[%s2] sm:$0x1]
  %v56 = vperm.slane %v54, 0
  %vm58 = vcmask 64512
  %v60 = vsel %vm58, %v45, 0
  %v63 = vsel %vm58, %v46, 0
  %v66 = vsel %vm58, %v47, 0
  %v69 = vsel %vm58, %v48, 0
  %v72 = vsel %vm58, %v49, 0
  %v75 = vsel %vm58, %v50, 0
  %v78 = vsel %vm58, %v51, 0
  %v81 = vsel %vm58, %v52, 0
  %vm83 = vcmask 1043456
  %v85 = vsel %vm83, %v53, 0
  %87 = vmatpush.bf16.msra.mxu0 0
  %88 = vmatpush.bf16.msra.mxu0 0
  %89 = vmatpush.bf16.msra.mxu0 0
  %90 = vmatpush.bf16.msra.mxu0 0
  %91 = vmatpush.bf16.msra.mxu0 0
  %92 = vmatpush.bf16.msra.mxu0 0
  %93 = vmatpush.bf16.msra.mxu0 0
  %94 = vmatpush.bf16.msra.mxu0 %v85
  %95 = vmatmul.bf16.gmra.mxu0 %v60
  %v96 = vpop.f32.mrf.mxu0
  %v97 = vadd.f32 %v56, %v96
  %v98 = vpop.f32.mrf.mxu0
  %v99 = vadd.f32 %v56, %v98
  %100 = vmatmul.bf16.gmra.mxu0 %v63
  %v101 = vpop.f32.mrf.mxu0
  %v102 = vadd.f32 %v56, %v101
  %v103 = vpop.f32.mrf.mxu0
  %v104 = vadd.f32 %v56, %v103
  %105 = vmatmul.bf16.gmra.mxu0 %v66
  %v106 = vpop.f32.mrf.mxu0
  %v107 = vadd.f32 %v56, %v106
  %v108 = vpop.f32.mrf.mxu0
  %v109 = vadd.f32 %v56, %v108
  %110 = vmatmul.bf16.gmra.mxu0 %v69
  %v111 = vpop.f32.mrf.mxu0
  %v112 = vadd.f32 %v56, %v111
  %v113 = vpop.f32.mrf.mxu0
  %v114 = vadd.f32 %v56, %v113
  %115 = vmatmul.bf16.gmra.mxu0 %v72
  %v116 = vpop.f32.mrf.mxu0
  %v117 = vadd.f32 %v56, %v116
  %v118 = vpop.f32.mrf.mxu0
  %v119 = vadd.f32 %v56, %v118
  %120 = vmatmul.bf16.gmra.mxu0 %v75
  %v121 = vpop.f32.mrf.mxu0
  %v122 = vadd.f32 %v56, %v121
  %v123 = vpop.f32.mrf.mxu0
  %v124 = vadd.f32 %v56, %v123
  %125 = vmatmul.bf16.gmra.mxu0 %v78
  %v126 = vpop.f32.mrf.mxu0
  %v127 = vadd.f32 %v56, %v126
  %v128 = vpop.f32.mrf.mxu0
  %v129 = vadd.f32 %v56, %v128
  %130 = vmatmul.bf16.gmra.mxu0 %v81
  %v131 = vpop.f32.mrf.mxu0
  %v132 = vadd.f32 %v56, %v131
  %v133 = vpop.f32.mrf.mxu0
  %v134 = vadd.f32 %v56, %v133
  %135 = vdwg.mxu0
  %v136 = vmax.f32 %v97, 0.0
  %v137 = vmax.f32 %v99, 0.0
  %v138 = vmax.f32 %v102, 0.0
  %v139 = vmax.f32 %v104, 0.0
  %v140 = vmax.f32 %v107, 0.0
  %v141 = vmax.f32 %v109, 0.0
  %v142 = vmax.f32 %v112, 0.0
  %v143 = vmax.f32 %v114, 0.0
  %v144 = vmax.f32 %v117, 0.0
  %v145 = vmax.f32 %v119, 0.0
  %v146 = vmax.f32 %v122, 0.0
  %v147 = vmax.f32 %v124, 0.0
  %v148 = vmax.f32 %v127, 0.0
  %v149 = vmax.f32 %v129, 0.0
  %v150 = vmax.f32 %v132, 0.0
  %v151 = vmax.f32 %v134, 0.0
  %v152 = vpack.c.bf16 %v137, %v136
  %v153 = vpack.c.bf16 %v139, %v138
  %v154 = vpack.c.bf16 %v141, %v140
  %v155 = vpack.c.bf16 %v143, %v142
  %v156 = vpack.c.bf16 %v145, %v144
  %v157 = vpack.c.bf16 %v147, %v146
  %v158 = vpack.c.bf16 %v149, %v148
  %v159 = vpack.c.bf16 %v151, %v150
  %v160 = vld [vmem:[%s3] sm:$0xf]
  %v161 = vld [vmem:[%s3 + $0x4] sm:$0xf]
  %v162 = vld [vmem:[%s3 + $0x8] sm:$0xf]
  %v163 = vld [vmem:[%s3 + $0xc] sm:$0xf]
  %v164 = vld [vmem:[%s3 + $0x10] sm:$0xf]
  %v165 = vld [vmem:[%s3 + $0x14] sm:$0xf]
  %v166 = vld [vmem:[%s3 + $0x18] sm:$0xf]
  %v167 = vld [vmem:[%s3 + $0x1c] sm:$0xf]
  %v168 = vld [vmem:[%s4] sm:$0x1]
  %v170 = vperm.slane %v168, 0
  %v180 = vunpack.c.l.b16 %v160
  %v181 = vunpack.c.l.b16 %v161
  %v182 = vunpack.c.l.b16 %v162
  %v183 = vunpack.c.l.b16 %v163
  %v184 = vunpack.c.l.b16 %v164
  %v185 = vunpack.c.l.b16 %v165
  %v186 = vunpack.c.l.b16 %v166
  %v187 = vunpack.c.l.b16 %v167
  %v188 = vpack.c.b16 %v181, %v180
  %v189 = vpack.c.b16 %v183, %v182
  %v190 = vpack.c.b16 %v185, %v184
  %v191 = vpack.c.b16 %v187, %v186
  %vm196 = vcmask 523264
  %v198 = vsel %vm196, %v152, 0
  %v201 = vsel %vm196, %v153, 0
  %v204 = vsel %vm196, %v154, 0
  %v207 = vsel %vm196, %v155, 0
  %v210 = vsel %vm196, %v156, 0
  %v213 = vsel %vm196, %v157, 0
  %v216 = vsel %vm196, %v158, 0
  %v219 = vsel %vm196, %v159, 0
  %221 = vmatpush.bf16.msra.mxu0 0
  %222 = vmatpush.bf16.msra.mxu0 0
  %223 = vmatpush.bf16.msra.mxu0 0
  %224 = vmatpush.bf16.msra.mxu0 0
  %225 = vmatpush.bf16.msra.mxu0 %v191
  %226 = vmatpush.bf16.msra.mxu0 %v190
  %227 = vmatpush.bf16.msra.mxu0 %v189
  %228 = vmatpush.bf16.msra.mxu0 %v188
  %229 = vmatmul.bf16.gmra.mxu0 %v198
  %v230 = vpop.f32.mrf.mxu0
  %v231 = vadd.f32 %v170, %v230
  %v232 = vpop.f32.mrf.mxu0
  %v233 = vadd.f32 %v170, %v232
  %234 = vmatmul.bf16.gmra.mxu0 %v201
  %v235 = vpop.f32.mrf.mxu0
  %v236 = vadd.f32 %v170, %v235
  %v237 = vpop.f32.mrf.mxu0
  %v238 = vadd.f32 %v170, %v237
  %239 = vmatmul.bf16.gmra.mxu0 %v204
  %v240 = vpop.f32.mrf.mxu0
  %v241 = vadd.f32 %v170, %v240
  %v242 = vpop.f32.mrf.mxu0
  %v243 = vadd.f32 %v170, %v242
  %244 = vmatmul.bf16.gmra.mxu0 %v207
  %v245 = vpop.f32.mrf.mxu0
  %v246 = vadd.f32 %v170, %v245
  %v247 = vpop.f32.mrf.mxu0
  %v248 = vadd.f32 %v170, %v247
  %249 = vmatmul.bf16.gmra.mxu0 %v210
  %v250 = vpop.f32.mrf.mxu0
  %v251 = vadd.f32 %v170, %v250
  %v252 = vpop.f32.mrf.mxu0
  %v253 = vadd.f32 %v170, %v252
  %254 = vmatmul.bf16.gmra.mxu0 %v213
  %v255 = vpop.f32.mrf.mxu0
  %v256 = vadd.f32 %v170, %v255
  %v257 = vpop.f32.mrf.mxu0
  %v258 = vadd.f32 %v170, %v257
  %259 = vmatmul.bf16.gmra.mxu0 %v216
  %v260 = vpop.f32.mrf.mxu0
  %v261 = vadd.f32 %v170, %v260
  %v262 = vpop.f32.mrf.mxu0
  %v263 = vadd.f32 %v170, %v262
  %264 = vmatmul.bf16.gmra.mxu0 %v219
  %v265 = vpop.f32.mrf.mxu0
  %v266 = vadd.f32 %v170, %v265
  %v267 = vpop.f32.mrf.mxu0
  %v268 = vadd.f32 %v170, %v267
  %269 = vdwg.mxu0
  %v270 = vmax.f32 %v231, 0.0
  %v271 = vmax.f32 %v233, 0.0
  %v272 = vmax.f32 %v236, 0.0
  %v273 = vmax.f32 %v238, 0.0
  %v274 = vmax.f32 %v241, 0.0
  %v275 = vmax.f32 %v243, 0.0
  %v276 = vmax.f32 %v246, 0.0
  %v277 = vmax.f32 %v248, 0.0
  %v278 = vmax.f32 %v251, 0.0
  %v279 = vmax.f32 %v253, 0.0
  %v280 = vmax.f32 %v256, 0.0
  %v281 = vmax.f32 %v258, 0.0
  %v282 = vmax.f32 %v261, 0.0
  %v283 = vmax.f32 %v263, 0.0
  %v284 = vmax.f32 %v266, 0.0
  %v285 = vmax.f32 %v268, 0.0
  %v286 = vpack.c.bf16 %v271, %v270
  %v287 = vpack.c.bf16 %v273, %v272
  %v288 = vpack.c.bf16 %v275, %v274
  %v289 = vpack.c.bf16 %v277, %v276
  %v290 = vpack.c.bf16 %v279, %v278
  %v291 = vpack.c.bf16 %v281, %v280
  %v292 = vpack.c.bf16 %v283, %v282
  %v293 = vpack.c.bf16 %v285, %v284
  %v294 = vld [vmem:[%s5] sm:$0xf]
  %v295 = vld [vmem:[%s5 + $0x4] sm:$0xf]
  %v296 = vld [vmem:[%s5 + $0x8] sm:$0xf]
  %v297 = vld [vmem:[%s5 + $0xc] sm:$0xf]
  %v298 = vld [vmem:[%s5 + $0x10] sm:$0xf]
  %v299 = vld [vmem:[%s5 + $0x14] sm:$0xf]
  %v300 = vld [vmem:[%s5 + $0x18] sm:$0xf]
  %v301 = vld [vmem:[%s5 + $0x1c] sm:$0xf]
  %v302 = vld [vmem:[%s6] sm:$0x1]
  %v304 = vperm.slane %v302, 0
  %v314 = vunpack.c.l.b16 %v294
  %v315 = vunpack.c.l.b16 %v295
  %v316 = vunpack.c.l.b16 %v296
  %v317 = vunpack.c.l.b16 %v297
  %v318 = vunpack.c.l.b16 %v298
  %v319 = vunpack.c.l.b16 %v299
  %v320 = vunpack.c.l.b16 %v300
  %v321 = vunpack.c.l.b16 %v301
  %v322 = vpack.c.b16 %v315, %v314
  %v323 = vpack.c.b16 %v317, %v316
  %v324 = vpack.c.b16 %v319, %v318
  %v325 = vpack.c.b16 %v321, %v320
  %v331 = vsel %vm196, %v286, 0
  %v334 = vsel %vm196, %v287, 0
  %v337 = vsel %vm196, %v288, 0
  %v340 = vsel %vm196, %v289, 0
  %v343 = vsel %vm196, %v290, 0
  %v346 = vsel %vm196, %v291, 0
  %v349 = vsel %vm196, %v292, 0
  %v352 = vsel %vm196, %v293, 0
  %354 = vmatpush.bf16.msra.mxu0 0
  %355 = vmatpush.bf16.msra.mxu0 0
  %356 = vmatpush.bf16.msra.mxu0 0
  %357 = vmatpush.bf16.msra.mxu0 0
  %358 = vmatpush.bf16.msra.mxu0 %v325
  %359 = vmatpush.bf16.msra.mxu0 %v324
  %360 = vmatpush.bf16.msra.mxu0 %v323
  %361 = vmatpush.bf16.msra.mxu0 %v322
  %362 = vmatmul.bf16.gmra.mxu0 %v331
  %v363 = vpop.f32.mrf.mxu0
  %v364 = vadd.f32 %v304, %v363
  %v365 = vpop.f32.mrf.mxu0
  %v366 = vadd.f32 %v304, %v365
  %367 = vmatmul.bf16.gmra.mxu0 %v334
  %v368 = vpop.f32.mrf.mxu0
  %v369 = vadd.f32 %v304, %v368
  %v370 = vpop.f32.mrf.mxu0
  %v371 = vadd.f32 %v304, %v370
  %372 = vmatmul.bf16.gmra.mxu0 %v337
  %v373 = vpop.f32.mrf.mxu0
  %v374 = vadd.f32 %v304, %v373
  %v375 = vpop.f32.mrf.mxu0
  %v376 = vadd.f32 %v304, %v375
  %377 = vmatmul.bf16.gmra.mxu0 %v340
  %v378 = vpop.f32.mrf.mxu0
  %v379 = vadd.f32 %v304, %v378
  %v380 = vpop.f32.mrf.mxu0
  %v381 = vadd.f32 %v304, %v380
  %382 = vmatmul.bf16.gmra.mxu0 %v343
  %v383 = vpop.f32.mrf.mxu0
  %v384 = vadd.f32 %v304, %v383
  %v385 = vpop.f32.mrf.mxu0
  %v386 = vadd.f32 %v304, %v385
  %387 = vmatmul.bf16.gmra.mxu0 %v346
  %v388 = vpop.f32.mrf.mxu0
  %v389 = vadd.f32 %v304, %v388
  %v390 = vpop.f32.mrf.mxu0
  %v391 = vadd.f32 %v304, %v390
  %392 = vmatmul.bf16.gmra.mxu0 %v349
  %v393 = vpop.f32.mrf.mxu0
  %v394 = vadd.f32 %v304, %v393
  %v395 = vpop.f32.mrf.mxu0
  %v396 = vadd.f32 %v304, %v395
  %397 = vmatmul.bf16.gmra.mxu0 %v352
  %v398 = vpop.f32.mrf.mxu0
  %v399 = vadd.f32 %v304, %v398
  %v400 = vpop.f32.mrf.mxu0
  %v401 = vadd.f32 %v304, %v400
  %402 = vdwg.mxu0
  %v403 = vtanh.pop %v364
  %v404 = vtanh.pop %v366
  %v405 = vtanh.pop %v369
  %v406 = vtanh.pop %v371
  %v407 = vtanh.pop %v374
  %v408 = vtanh.pop %v376
  %v409 = vtanh.pop %v379
  %v410 = vtanh.pop %v381
  %v411 = vtanh.pop %v384
  %v412 = vtanh.pop %v386
  %v413 = vtanh.pop %v389
  %v414 = vtanh.pop %v391
  %v415 = vtanh.pop %v394
  %v416 = vtanh.pop %v396
  %v417 = vtanh.pop %v399
  %v418 = vtanh.pop %v401
  %v419 = vmul.f32 %v403, 1.442695
  %v420 = vpow.pop %v419
  %v421 = vmul.f32 %v404, 1.442695
  %v422 = vpow.pop %v421
  %v423 = vmul.f32 %v405, 1.442695
  %v424 = vpow.pop %v423
  %v425 = vmul.f32 %v406, 1.442695
  %v426 = vpow.pop %v425
  %v427 = vmul.f32 %v407, 1.442695
  %v428 = vpow.pop %v427
  %v429 = vmul.f32 %v408, 1.442695
  %v430 = vpow.pop %v429
  %v431 = vmul.f32 %v409, 1.442695
  %v432 = vpow.pop %v431
  %v433 = vmul.f32 %v410, 1.442695
  %v434 = vpow.pop %v433
  %v435 = vmul.f32 %v411, 1.442695
  %v436 = vpow.pop %v435
  %v437 = vmul.f32 %v412, 1.442695
  %v438 = vpow.pop %v437
  %v439 = vmul.f32 %v413, 1.442695
  %v440 = vpow.pop %v439
  %v441 = vmul.f32 %v414, 1.442695
  %v442 = vpow.pop %v441
  %v443 = vmul.f32 %v415, 1.442695
  %v444 = vpow.pop %v443
  %v445 = vmul.f32 %v416, 1.442695
  %v446 = vpow.pop %v445
  %v447 = vmul.f32 %v417, 1.442695
  %v448 = vpow.pop %v447
  %v449 = vmul.f32 %v418, 1.442695
  %v450 = vpow.pop %v449
  %467 = vrot.lane.b32.xlu0 %v420, 8
  %v468 = vpop.permute.xlu0 %467
  %469 = vrot.lane.b32.xlu0 %v422, 8
  %v470 = vpop.permute.xlu0 %469
  %471 = vrot.lane.b32.xlu0 %v424, 8
  %v472 = vpop.permute.xlu0 %471
  %473 = vrot.lane.b32.xlu0 %v426, 8
  %v474 = vpop.permute.xlu0 %473
  %475 = vrot.lane.b32.xlu0 %v428, 8
  %v476 = vpop.permute.xlu0 %475
  %477 = vrot.lane.b32.xlu0 %v430, 8
  %v478 = vpop.permute.xlu0 %477
  %479 = vrot.lane.b32.xlu0 %v432, 8
  %v480 = vpop.permute.xlu0 %479
  %481 = vrot.lane.b32.xlu0 %v434, 8
  %v482 = vpop.permute.xlu0 %481
  %483 = vrot.lane.b32.xlu0 %v436, 8
  %v484 = vpop.permute.xlu0 %483
  %485 = vrot.lane.b32.xlu0 %v438, 8
  %v486 = vpop.permute.xlu0 %485
  %487 = vrot.lane.b32.xlu0 %v440, 8
  %v488 = vpop.permute.xlu0 %487
  %489 = vrot.lane.b32.xlu0 %v442, 8
  %v490 = vpop.permute.xlu0 %489
  %491 = vrot.lane.b32.xlu0 %v444, 8
  %v492 = vpop.permute.xlu0 %491
  %493 = vrot.lane.b32.xlu0 %v446, 8
  %v494 = vpop.permute.xlu0 %493
  %495 = vrot.lane.b32.xlu0 %v448, 8
  %v496 = vpop.permute.xlu0 %495
  %497 = vrot.lane.b32.xlu0 %v450, 8
  %v498 = vpop.permute.xlu0 %497
  %v515 = vmul.f32 %v29, %v468
  %v516 = vmul.f32 %v30, %v470
  %v517 = vmul.f32 %v31, %v472
  %v518 = vmul.f32 %v32, %v474
  %v519 = vmul.f32 %v33, %v476
  %v520 = vmul.f32 %v34, %v478
  %v521 = vmul.f32 %v35, %v480
  %v522 = vmul.f32 %v36, %v482
  %v523 = vmul.f32 %v37, %v484
  %v524 = vmul.f32 %v38, %v486
  %v525 = vmul.f32 %v39, %v488
  %v526 = vmul.f32 %v40, %v490
  %v527 = vmul.f32 %v41, %v492
  %v528 = vmul.f32 %v42, %v494
  %v529 = vmul.f32 %v43, %v496
  %v530 = vmul.f32 %v44, %v498
  %v531 = vadd.f32 %v515, %v364
  %v532 = vadd.f32 %v516, %v366
  %v533 = vadd.f32 %v517, %v369
  %v534 = vadd.f32 %v518, %v371
  %v535 = vadd.f32 %v519, %v374
  %v536 = vadd.f32 %v520, %v376
  %v537 = vadd.f32 %v521, %v379
  %v538 = vadd.f32 %v522, %v381
  %v539 = vadd.f32 %v523, %v384
  %v540 = vadd.f32 %v524, %v386
  %v541 = vadd.f32 %v525, %v389
  %v542 = vadd.f32 %v526, %v391
  %v543 = vadd.f32 %v527, %v394
  %v544 = vadd.f32 %v528, %v396
  %v545 = vadd.f32 %v529, %v399
  %v546 = vadd.f32 %v530, %v401
  %547 = vst.msk [vmem:[%s7] sm:$0xff] %vm58, %v29
  %548 = vst.msk [vmem:[%s7 + $0x8] sm:$0xff] %vm58, %v30
  %549 = vst.msk [vmem:[%s7 + $0x10] sm:$0xff] %vm58, %v31
  %550 = vst.msk [vmem:[%s7 + $0x18] sm:$0xff] %vm58, %v32
  %551 = vst.msk [vmem:[%s7 + $0x20] sm:$0xff] %vm58, %v33
  %552 = vst.msk [vmem:[%s7 + $0x28] sm:$0xff] %vm58, %v34
  %553 = vst.msk [vmem:[%s7 + $0x30] sm:$0xff] %vm58, %v35
  %554 = vst.msk [vmem:[%s7 + $0x38] sm:$0xff] %vm58, %v36
  %555 = vst.msk [vmem:[%s7 + $0x40] sm:$0xff] %vm58, %v37
  %556 = vst.msk [vmem:[%s7 + $0x48] sm:$0xff] %vm58, %v38
  %557 = vst.msk [vmem:[%s7 + $0x50] sm:$0xff] %vm58, %v39
  %558 = vst.msk [vmem:[%s7 + $0x58] sm:$0xff] %vm58, %v40
  %559 = vst.msk [vmem:[%s7 + $0x60] sm:$0xff] %vm58, %v41
  %560 = vst.msk [vmem:[%s7 + $0x68] sm:$0xff] %vm58, %v42
  %561 = vst.msk [vmem:[%s7 + $0x70] sm:$0xff] %vm58, %v43
  %562 = vst.msk [vmem:[%s7 + $0x78] sm:$0xff] %vm58, %v44
  %vm563 = vcmask 130112
  %564 = vst.msk [vmem:[%s7] sm:$0xff] %vm563, %v531
  %565 = vst.msk [vmem:[%s7 + $0x8] sm:$0xff] %vm563, %v532
  %566 = vst.msk [vmem:[%s7 + $0x10] sm:$0xff] %vm563, %v533
  %567 = vst.msk [vmem:[%s7 + $0x18] sm:$0xff] %vm563, %v534
  %568 = vst.msk [vmem:[%s7 + $0x20] sm:$0xff] %vm563, %v535
  %569 = vst.msk [vmem:[%s7 + $0x28] sm:$0xff] %vm563, %v536
  %570 = vst.msk [vmem:[%s7 + $0x30] sm:$0xff] %vm563, %v537
  %571 = vst.msk [vmem:[%s7 + $0x38] sm:$0xff] %vm563, %v538
  %572 = vst.msk [vmem:[%s7 + $0x40] sm:$0xff] %vm563, %v539
  %573 = vst.msk [vmem:[%s7 + $0x48] sm:$0xff] %vm563, %v540
  %574 = vst.msk [vmem:[%s7 + $0x50] sm:$0xff] %vm563, %v541
  %575 = vst.msk [vmem:[%s7 + $0x58] sm:$0xff] %vm563, %v542
  %576 = vst.msk [vmem:[%s7 + $0x60] sm:$0xff] %vm563, %v543
  %577 = vst.msk [vmem:[%s7 + $0x68] sm:$0xff] %vm563, %v544
  %578 = vst.msk [vmem:[%s7 + $0x70] sm:$0xff] %vm563, %v545
  %579 = vst.msk [vmem:[%s7 + $0x78] sm:$0xff] %vm563, %v546
  %v580 = vsel %vm58, %v403, 0.0
  %581 = vadd.xlane.f32.xlu0 %v580
  %v582 = vpop.xlane.xlu0 %581
  %v583 = vsel %vm58, %v404, 0.0
  %584 = vadd.xlane.f32.xlu0 %v583
  %v585 = vpop.xlane.xlu0 %584
  %v586 = vsel %vm58, %v405, 0.0
  %587 = vadd.xlane.f32.xlu0 %v586
  %v588 = vpop.xlane.xlu0 %587
  %v589 = vsel %vm58, %v406, 0.0
  %590 = vadd.xlane.f32.xlu0 %v589
  %v591 = vpop.xlane.xlu0 %590
  %v592 = vsel %vm58, %v407, 0.0
  %593 = vadd.xlane.f32.xlu0 %v592
  %v594 = vpop.xlane.xlu0 %593
  %v595 = vsel %vm58, %v408, 0.0
  %596 = vadd.xlane.f32.xlu0 %v595
  %v597 = vpop.xlane.xlu0 %596
  %v598 = vsel %vm58, %v409, 0.0
  %599 = vadd.xlane.f32.xlu0 %v598
  %v600 = vpop.xlane.xlu0 %599
  %v601 = vsel %vm58, %v410, 0.0
  %602 = vadd.xlane.f32.xlu0 %v601
  %v603 = vpop.xlane.xlu0 %602
  %v604 = vsel %vm58, %v411, 0.0
  %605 = vadd.xlane.f32.xlu0 %v604
  %v606 = vpop.xlane.xlu0 %605
  %v607 = vsel %vm58, %v412, 0.0
  %608 = vadd.xlane.f32.xlu0 %v607
  %v609 = vpop.xlane.xlu0 %608
  %v610 = vsel %vm58, %v413, 0.0
  %611 = vadd.xlane.f32.xlu0 %v610
  %v612 = vpop.xlane.xlu0 %611
  %v613 = vsel %vm58, %v414, 0.0
  %614 = vadd.xlane.f32.xlu0 %v613
  %v615 = vpop.xlane.xlu0 %614
  %v616 = vsel %vm58, %v415, 0.0
  %617 = vadd.xlane.f32.xlu0 %v616
  %v618 = vpop.xlane.xlu0 %617
  %v619 = vsel %vm58, %v416, 0.0
  %620 = vadd.xlane.f32.xlu0 %v619
  %v621 = vpop.xlane.xlu0 %620
  %v622 = vsel %vm58, %v417, 0.0
  %623 = vadd.xlane.f32.xlu0 %v622
  %v624 = vpop.xlane.xlu0 %623
  %v625 = vsel %vm58, %v418, 0.0
  %626 = vadd.xlane.f32.xlu0 %v625
  %v627 = vpop.xlane.xlu0 %626
  %vm628 = vcmask 7168
  %629 = vst.msk [vmem:[%s8] sm:$0xff] %vm628, %v582
  %630 = vst.msk [vmem:[%s8 + $0x8] sm:$0xff] %vm628, %v585
  %631 = vst.msk [vmem:[%s8 + $0x10] sm:$0xff] %vm628, %v588
  %632 = vst.msk [vmem:[%s8 + $0x18] sm:$0xff] %vm628, %v591
  %633 = vst.msk [vmem:[%s8 + $0x20] sm:$0xff] %vm628, %v594
  %634 = vst.msk [vmem:[%s8 + $0x28] sm:$0xff] %vm628, %v597
  %635 = vst.msk [vmem:[%s8 + $0x30] sm:$0xff] %vm628, %v600
  %636 = vst.msk [vmem:[%s8 + $0x38] sm:$0xff] %vm628, %v603
  %637 = vst.msk [vmem:[%s8 + $0x40] sm:$0xff] %vm628, %v606
  %638 = vst.msk [vmem:[%s8 + $0x48] sm:$0xff] %vm628, %v609
  %639 = vst.msk [vmem:[%s8 + $0x50] sm:$0xff] %vm628, %v612
  %640 = vst.msk [vmem:[%s8 + $0x58] sm:$0xff] %vm628, %v615
  %641 = vst.msk [vmem:[%s8 + $0x60] sm:$0xff] %vm628, %v618
  %642 = vst.msk [vmem:[%s8 + $0x68] sm:$0xff] %vm628, %v621
  %643 = vst.msk [vmem:[%s8 + $0x70] sm:$0xff] %vm628, %v624
  %644 = vst.msk [vmem:[%s8 + $0x78] sm:$0xff] %vm628, %v627
  // Predicated region
  $region30: #{affine_coupling_forward.1} parent=0 // pred_check
    _
  $region31: #{affine_coupling_forward.1} parent=0 // pred_check_branch
    %646 = sbr.rel (0) target = $region33
  $region32: #{affine_coupling_forward.1} parent=0 // pred_region
    _
  $region33: #{affine_coupling_forward.1} parent=0 // pred_fallthru
    _
  // Predicated region
  $region34: #{affine_coupling_forward.1} parent=0 // pred_check
    _
  $region35: #{affine_coupling_forward.1} parent=0 // pred_check_branch
    %648 = sbr.rel (0) target = $region37
  $region36: #{affine_coupling_forward.1} parent=0 // pred_region
    _
  $region37: #{affine_coupling_forward.1} parent=0 // pred_fallthru
    _
  // Predicated region
  $region38: #{affine_coupling_forward.1} parent=0 // pred_check
    _
  $region39: #{affine_coupling_forward.1} parent=0 // pred_check_branch
    %650 = sbr.rel (0) target = $region41
  $region40: #{affine_coupling_forward.1} parent=0 // pred_region
    _
  $region41: #{affine_coupling_forward.1} parent=0 // pred_fallthru
    _
  // Predicated region
  $region42: #{affine_coupling_forward.1} parent=0 // pred_check
    _
  $region43: #{affine_coupling_forward.1} parent=0 // pred_check_branch
    %652 = sbr.rel (0) target = $region45
  $region44: #{affine_coupling_forward.1} parent=0 // pred_region
    _
  $region45: #{affine_coupling_forward.1} parent=0 // pred_fallthru
    _

</llo_original>
